<compile_context>
chip_gen: v7x
topology: tpu7x:2x2x1
jax: 0.10.0
libtpu: 0.0.40
codegen_flags: <defaults>
</compile_context>

<pallas_src>
import jax
import jax.numpy as jnp
from jax.experimental import pallas as pl
from jax.experimental.pallas import tpu as pltpu

# ---------------------------------------------------------------------------
# "const" module stand-in
# ---------------------------------------------------------------------------
N_FEATURES = 32
DEPTH = 3
HIDDEN_SIZE = 8

MAX_BATCH_TILE = 8192   # rows are only 40 f32 wide -> even 8192-row tiles are a few MiB
MIN_GRID_STEPS = 2      # keep >= 2 steps for large batches (v7x has 2 TensorCores)


def _layer_dims():
    """(in_features, out_features) per Linear layer, forward order, + encoded index."""
    unit_scope = [N_FEATURES // 2 ** pw for pw in range(DEPTH)]   # [32, 16, 8]
    dims = []
    f = N_FEATURES
    for units in unit_scope[1:]:          # downsamplers
        dims.append((f, units)); f = units
    dims.append((f, HIDDEN_SIZE))         # encoded
    enc_idx = len(dims) - 1
    f = HIDDEN_SIZE
    for units in unit_scope[::-1]:        # upsamplers
        dims.append((f, units)); f = units
    return dims, enc_idx


def _round_up(x, m):
    return ((x + m - 1) // m) * m


# ---------------------------------------------------------------------------
# Affine composition (outside the kernel; weights are static per call)
# ---------------------------------------------------------------------------
def fuse_params(weights, biases, enc_idx):
    """Compose the whole Linear chain into one affine map producing [out_x | enc]."""
    n_feat = weights[0].shape[0]
    hid = weights[enc_idx].shape[1]

    # encoder: layers 0 .. enc_idx        -> enc = x @ A + c
    A = jnp.eye(n_feat, dtype=jnp.float32)
    c = jnp.zeros((1, n_feat), dtype=jnp.float32)
    for w, b in zip(weights[:enc_idx + 1], biases[:enc_idx + 1]):
        A = A @ w
        c = c @ w + b

    # decoder: layers enc_idx+1 .. end    -> out_x = enc @ Ad + cd
    Ad = jnp.eye(hid, dtype=jnp.float32)
    cd = jnp.zeros((1, hid), dtype=jnp.float32)
    for w, b in zip(weights[enc_idx + 1:], biases[enc_idx + 1:]):
        Ad = Ad @ w
        cd = cd @ w + b

    # single fused map: x @ W_full + b_full = [out_x | enc]   (32, 40) / (1, 40)
    w_full = jnp.concatenate([A @ Ad, A], axis=1)
    b_full = jnp.concatenate([c @ Ad + cd, c], axis=1)
    return w_full, b_full


# ---------------------------------------------------------------------------
# Pallas kernel: one MXU matmul, two narrow direct outputs
# ---------------------------------------------------------------------------
def _fused_autoencoder_kernel(x_ref, w_ref, b_ref, out_x_ref, enc_ref):
    n_out = out_x_ref.shape[-1]
    n_hid = enc_ref.shape[-1]
    y = jnp.dot(x_ref[...], w_ref[...],
                preferred_element_type=jnp.float32) + b_ref[...]
    out_x_ref[...] = y[:, :n_out].astype(out_x_ref.dtype)
    enc_ref[...] = y[:, n_out:n_out + n_hid].astype(enc_ref.dtype)


def _choose_tile(batch):
    """Pick (tile_rows, grid_steps): big tiles, >=2 steps for large batches, no padding
    needed for the single-block case (block dim == full batch dim)."""
    n_steps = max(pl.cdiv(batch, MAX_BATCH_TILE),
                  MIN_GRID_STEPS if batch >= 2 * 8 else 1)
    tb = _round_up(pl.cdiv(batch, n_steps), 8)
    if tb >= batch:
        return batch, 1                       # block == full array dim (always legal)
    return tb, pl.cdiv(batch, tb)             # ragged last block handled by Pallas


def model_forward(x, w_full, b_full):
    """x: (B, N_FEATURES) f32 -> (out_x (B, N_FEATURES), enc (B, HIDDEN_SIZE))."""
    batch, n_feat = x.shape
    n_full = w_full.shape[1]                  # n_feat + hidden
    hid = n_full - n_feat

    tb, n_steps = _choose_tile(batch)

    cost = pl.CostEstimate(
        flops=2 * batch * n_feat * n_full,
        transcendentals=0,
        bytes_accessed=4 * (batch * n_feat            # x read
                            + n_feat * n_full + n_full  # weights + bias
                            + batch * n_full),          # out_x + enc writes
    )

    out_x, enc = pl.pallas_call(
        _fused_autoencoder_kernel,
        out_shape=(jax.ShapeDtypeStruct((batch, n_feat), jnp.float32),
                   jax.ShapeDtypeStruct((batch, hid), jnp.float32)),
        grid=(n_steps,),
        in_specs=[
            pl.BlockSpec((tb, n_feat), lambda i: (i, 0)),       # activations: tiled
            pl.BlockSpec((n_feat, n_full), lambda i: (0, 0)),   # W_full: VMEM-resident
            pl.BlockSpec((1, n_full), lambda i: (0, 0)),        # b_full: VMEM-resident
        ],
        out_specs=(
            pl.BlockSpec((tb, n_feat), lambda i: (i, 0)),       # out_x: narrow direct write
            pl.BlockSpec((tb, hid), lambda i: (i, 0)),          # enc:   narrow direct write
        ),
        compiler_params=pltpu.CompilerParams(
            dimension_semantics=("parallel",)),                 # shards batch across TCs (v7x)
        cost_estimate=cost,
    )(x, w_full, b_full)

    return out_x, enc


# ---------------------------------------------------------------------------
# Deterministic parameter init + plain-JAX reference
# ---------------------------------------------------------------------------
def init_params(key):
    dims, enc_idx = _layer_dims()
    weights, biases = [], []
    for (fin, fout) in dims:
        kw, kb, key = jax.random.split(key, 3)
        bound = 1.0 / jnp.sqrt(jnp.float32(fin))
        weights.append(jax.random.uniform(kw, (fin, fout), jnp.float32, -bound, bound))
        biases.append(jax.random.uniform(kb, (1, fout), jnp.float32, -bound, bound))
    return weights, biases, enc_idx


def reference_forward(x, weights, biases, enc_idx):
    h = x
    enc = None
    for i, (w, b) in enumerate(zip(weights, biases)):
        h = h @ w + b
        if i == enc_idx:
            enc = h
    return h, enc


def _check(batch, key, weights, biases, enc_idx, fused):
    x = jax.random.normal(key, (batch, N_FEATURES), jnp.float32)
    out_x, out_enc = jax.block_until_ready(model_forward(x, *fused))
    ref_x, ref_enc = reference_forward(x, weights, biases, enc_idx)
    assert out_x.shape == (batch, N_FEATURES)
    assert out_enc.shape == (batch, HIDDEN_SIZE)
    assert jnp.allclose(out_x, ref_x, atol=1e-4, rtol=1e-4)
    assert jnp.allclose(out_enc, ref_enc, atol=1e-4, rtol=1e-4)


if __name__ == "__main__":
    key = jax.random.PRNGKey(0)
    kx1, kx2, kx3, kp = jax.random.split(key, 4)

    weights, biases, enc_idx = init_params(kp)
    fused = fuse_params(weights, biases, enc_idx)

    _check(4, kx1, weights, biases, enc_idx, fused)      # tiny batch: single full block
    _check(1000, kx2, weights, biases, enc_idx, fused)   # ragged batch: edge block, no pad
    _check(2048, kx3, weights, biases, enc_idx, fused)   # even batch: 2 parallel grid steps

    print("KERNEL_OK")
</pallas_src>

<mosaic_0001>
module attributes {stable_mosaic.version = 11 : i64} {
  func.func @_fused_autoencoder_kernel(%arg0: i32, %arg1: memref<4x32xf32, #tpu.memory_space<vmem>>, %arg2: memref<32x40xf32, #tpu.memory_space<vmem>>, %arg3: memref<1x40xf32, #tpu.memory_space<vmem>>, %arg4: memref<4x32xf32, #tpu.memory_space<vmem>>, %arg5: memref<4x8xf32, #tpu.memory_space<vmem>>) attributes {dimension_semantics = [#tpu.dimension_semantics<parallel>], iteration_bounds = array<i64: 1>, scalar_prefetch = 0 : i64, scratch_operands = 0 : i64, tpu.core_type = #tpu.core_type<tc>, window_params = [{transform_indices = @transform_0, window_bounds = array<i64: 4, 32>}, {pipeline_mode = #tpu.pipeline_mode<synchronous>, transform_indices = @transform_1, window_bounds = array<i64: 32, 40>}, {pipeline_mode = #tpu.pipeline_mode<synchronous>, transform_indices = @transform_2, window_bounds = array<i64: 1, 40>}, {transform_indices = @transform_3, window_bounds = array<i64: 4, 32>}, {transform_indices = @transform_4, window_bounds = array<i64: 4, 8>}]} {
    %c0 = arith.constant 0 : index
    %c0_0 = arith.constant 0 : index
    %0 = vector.load %arg1[%c0, %c0_0] : memref<4x32xf32, #tpu.memory_space<vmem>>, vector<4x32xf32>
    %c0_1 = arith.constant 0 : index
    %c0_2 = arith.constant 0 : index
    %1 = vector.load %arg2[%c0_1, %c0_2] : memref<32x40xf32, #tpu.memory_space<vmem>>, vector<32x40xf32>
    %cst = arith.constant dense<0.000000e+00> : vector<4x40xf32>
    %2 = tpu.matmul %0, %1, %cst {dimension_numbers = #tpu.dot_dimension_numbers<[1], [0], [0], [1], [0, 0, 1, 1], [], []>} : vector<4x32xf32>, vector<32x40xf32>, vector<4x40xf32> -> vector<4x40xf32>
    %c0_3 = arith.constant 0 : index
    %c0_4 = arith.constant 0 : index
    %3 = vector.load %arg3[%c0_3, %c0_4] : memref<1x40xf32, #tpu.memory_space<vmem>>, vector<1x40xf32>
    %4 = vector.broadcast %3 : vector<1x40xf32> to vector<4x40xf32>
    %5 = arith.addf %2, %4 : vector<4x40xf32>
    %6 = vector.extract_strided_slice %5 {offsets = [0, 0], sizes = [4, 32], strides = [1, 1]} : vector<4x40xf32> to vector<4x32xf32>
    %c0_5 = arith.constant 0 : index
    %c0_6 = arith.constant 0 : index
    %7 = vector.load %arg4[%c0_5, %c0_6] : memref<4x32xf32, #tpu.memory_space<vmem>>, vector<4x32xf32>
    tpu.vector_store %arg4[%c0_5, %c0_6], %6 {strides = array<i32>} : memref<4x32xf32, #tpu.memory_space<vmem>>, vector<4x32xf32>,
    %8 = vector.extract_strided_slice %5 {offsets = [0, 32], sizes = [4, 8], strides = [1, 1]} : vector<4x40xf32> to vector<4x8xf32>
    %c0_7 = arith.constant 0 : index
    %c0_8 = arith.constant 0 : index
    %9 = vector.load %arg5[%c0_7, %c0_8] : memref<4x8xf32, #tpu.memory_space<vmem>>, vector<4x8xf32>
    tpu.vector_store %arg5[%c0_7, %c0_8], %8 {strides = array<i32>} : memref<4x8xf32, #tpu.memory_space<vmem>>, vector<4x8xf32>,
    return
  }
  func.func @transform_0(%arg0: i32) -> (i32, i32) {
    %c0_i32 = arith.constant 0 : i32
    %c0_i32_0 = arith.constant 0 : i32
    return %arg0, %c0_i32 : i32, i32
  }
  func.func @transform_1(%arg0: i32) -> (i32, i32) {
    %c0_i32 = arith.constant 0 : i32
    %c0_i32_0 = arith.constant 0 : i32
    %c0_i32_1 = arith.constant 0 : i32
    return %c0_i32, %c0_i32_0 : i32, i32
  }
  func.func @transform_2(%arg0: i32) -> (i32, i32) {
    %c0_i32 = arith.constant 0 : i32
    %c0_i32_0 = arith.constant 0 : i32
    %c0_i32_1 = arith.constant 0 : i32
    return %c0_i32, %c0_i32_0 : i32, i32
  }
  func.func @transform_3(%arg0: i32) -> (i32, i32) {
    %c0_i32 = arith.constant 0 : i32
    %c0_i32_0 = arith.constant 0 : i32
    return %arg0, %c0_i32 : i32, i32
  }
  func.func @transform_4(%arg0: i32) -> (i32, i32) {
    %c0_i32 = arith.constant 0 : i32
    %c0_i32_0 = arith.constant 0 : i32
    return %arg0, %c0_i32 : i32, i32
  }
}

</mosaic_0001>

<llo_original>
// kernel: tpu_custom_call.1
$region0: #{tpu_custom_call.1}
  #allocation0 [shape = 'u32[]', space=smem, size = 0x4, offset = 0x4, fixed_abs, tag = 'smem constant byte address 0x4 - core index']
  #allocation1 [shape = 'u32[144,128]{1,0:T(1,128)}', space=vmem, size = 0x12000, scoped, tag = 'internal scratch']
  %s0 = inlined_call_operand.hbm [shape: f32[4,32], index: 0, kind: input, shape index: {}]
  %s1 = inlined_call_operand.hbm [shape: f32[32,40], index: 1, kind: input, shape index: {}]
  %s2 = inlined_call_operand.vmem [shape: f32[1,40], index: 2, kind: input, shape index: {}]
  %s3 = inlined_call_operand.hbm [shape: f32[4,32], index: 3, kind: output, shape index: {0}]
  %s4 = inlined_call_operand.hbm [shape: f32[4,8], index: 4, kind: output, shape index: {1}]
  %5 = xla_tuple %s3, %s4
  %s6 = sld [smem:[#allocation0]]
  $region38: #{tpu_custom_call.1} parent=0
    _
  %s8 = ssub.s32 1, %s6
  %s9 = scalar_select 0, %s8, %s6
  $region1: #{tpu_custom_call.1} parent=0
    #allocation2 [shape = 'u8[2048]{0}', space=vmem, size = 0x800, scoped, tag = 'input window, operand 0, single buffered']
    #allocation3 [shape = 's32[1]{0}', space=sflag, size = 0x4, scoped, tag = 'scoped memory for tpu_custom_call.1']
    #allocation4 [shape = 's32[1]{0}', space=sflag, size = 0x4, scoped, tag = 'scoped memory for tpu_custom_call.1']
    #allocation5 [shape = 'u8[16384]{0}', space=vmem, size = 0x4000, scoped, tag = 'input window, operand 1, single buffered']
    #allocation6 [shape = 's32[1]{0}', space=sflag, size = 0x4, scoped, tag = 'scoped memory for tpu_custom_call.1']
    #allocation7 [shape = 'u8[2048]{0}', space=vmem, size = 0x800, scoped, tag = 'output window, operand 0, single buffered']
    #allocation8 [shape = 'u8[2048]{0}', space=vmem, size = 0x800, scoped, tag = 'output window, operand 1, single buffered']
    #allocation9 [shape = 's32[1]{0}', space=sflag, size = 0x4, scoped, tag = 'scoped memory for tpu_custom_call.1']
    %10 = vsyncpa [#allocation3], 0
    %11 = vsyncpa [#allocation6], 0
    %12 = vsyncpa [#allocation4], 0
    %13 = vsyncpa [#allocation9], 0
    // Predicated region
    $region2: #{tpu_custom_call.1} parent=1 // pred_check
      _
    $region3: #{tpu_custom_call.1} parent=1 // pred_check_branch
      %15 = sbr.rel (0) target = $region5
    $region4: #{tpu_custom_call.1} parent=1 // pred_region
      %s17 = ssub.s32 64, 64
      %18 = vsyncadd [#allocation3], %s17
      %s20 = sshll.u32 [#allocation2], 4
      %s21 = int_to_ptr.vmem [resolvable:$true] %s20
      %23 = dma.hbm_to_vmem [thread:$0]  %s0, 64, %s21, [#allocation3]
    $region5: #{tpu_custom_call.1} parent=1 // pred_fallthru
      _
    // Predicated region
    $region6: #{tpu_custom_call.1} parent=1 // pred_check
      _
    $region7: #{tpu_custom_call.1} parent=1 // pred_check_branch
      %25 = sbr.rel (0) target = $region9
    $region8: #{tpu_custom_call.1} parent=1 // pred_region
      %s27 = ssub.s32 512, 512
      %28 = vsyncadd [#allocation6], %s27
      %s29 = sshll.u32 [#allocation5], 4
      %s30 = int_to_ptr.vmem [resolvable:$true] %s29
      %35 = dma.hbm_to_vmem [thread:$0]  %s1, 512, %s30, [#allocation6], 128, 128, 8
    $region9: #{tpu_custom_call.1} parent=1 // pred_fallthru
      _
    // Predicated region
    $region10: #{tpu_custom_call.1} parent=1 // pred_check
      _
    $region11: #{tpu_custom_call.1} parent=1 // pred_check_branch
      %37 = sbr.rel (0) target = $region13
    $region12: #{tpu_custom_call.1} parent=1 // pred_region
      _
    $region13: #{tpu_custom_call.1} parent=1 // pred_fallthru
      _
    // Predicated region
    $region14: #{tpu_custom_call.1} parent=1 // pred_check
      _
    $region15: #{tpu_custom_call.1} parent=1 // pred_check_branch
      %39 = sbr.rel (0) target = $region17
    $region16: #{tpu_custom_call.1} parent=1 // pred_region
      %40 = dma.done [#allocation3], 64
    $region17: #{tpu_custom_call.1} parent=1 // pred_fallthru
      _
    // Predicated region
    $region18: #{tpu_custom_call.1} parent=1 // pred_check
      _
    $region19: #{tpu_custom_call.1} parent=1 // pred_check_branch
      %42 = sbr.rel (0) target = $region21
    $region20: #{tpu_custom_call.1} parent=1 // pred_region
      %43 = dma.done [#allocation6], 512
    $region21: #{tpu_custom_call.1} parent=1 // pred_fallthru
      _
    %v44 = vld [vmem:[#allocation2] sm:$0xf]
    %v45 = vld [vmem:[#allocation5] sm:$0xff]
    %v46 = vld [vmem:[#allocation5 + $0x8] sm:$0xff]
    %v47 = vld [vmem:[#allocation5 + $0x10] sm:$0xff]
    %v48 = vld [vmem:[#allocation5 + $0x18] sm:$0xff]
    %v49 = vld [vmem:[%s2] sm:$0x1]
    %v51 = vlaneseq
    %v52 = vshrl.u32 %v51, 7
    %v53 = vsub.s32 0, %v52
    %v54 = vrot.slane %v49, %v53
    %vm56 = vcmask 261120
    %v58 = vsel %vm56, %v44, 0
    %60 = vmatprep.subr.mxu0 0.0
    %61 = vmatpush1.msra.mxu0 %v45
    %62 = vmatprep.subr.mxu0 0.0
    %63 = vmatpush1.msra.mxu0 %v46
    %64 = vmatprep.subr.mxu0 0.0
    %65 = vmatpush1.msra.mxu0 %v47
    %66 = vmatprep.subr.mxu0 0.0
    %67 = vmatpush1.msra.mxu0 %v48
    %68 = vmatprep.subr.mxu0 0.0
    %69 = vmatpush1.msra.mxu0 0.0
    %70 = vmatprep.subr.mxu0 0.0
    %71 = vmatpush1.msra.mxu0 0.0
    %72 = vmatprep.subr.mxu0 0.0
    %73 = vmatpush1.msra.mxu0 0.0
    %74 = vmatprep.subr.mxu0 0.0
    %75 = vmatpush1.msra.mxu0 0.0
    %76 = vmatprep.subr.mxu0 0.0
    %77 = vmatpush1.msra.mxu0 0.0
    %78 = vmatprep.subr.mxu0 0.0
    %79 = vmatpush1.msra.mxu0 0.0
    %80 = vmatprep.subr.mxu0 0.0
    %81 = vmatpush1.msra.mxu0 0.0
    %82 = vmatprep.subr.mxu0 0.0
    %83 = vmatpush1.msra.mxu0 0.0
    %84 = vmatprep.subr.mxu0 0.0
    %85 = vmatpush1.msra.mxu0 0.0
    %86 = vmatprep.subr.mxu0 0.0
    %87 = vmatpush1.msra.mxu0 0.0
    %88 = vmatprep.subr.mxu0 0.0
    %89 = vmatpush1.msra.mxu0 0.0
    %90 = vmatprep.subr.mxu0 0.0
    %91 = vmatpush1.msra.mxu0 0.0
    %92 = vmatprep.subr.mxu0 0.0
    %93 = vmatpush1.msra.mxu0 0.0
    %94 = vmatprep.subr.mxu0 0.0
    %95 = vmatpush1.msra.mxu0 0.0
    %96 = vmatprep.subr.mxu0 0.0
    %97 = vmatpush1.msra.mxu0 0.0
    %98 = vmatprep.subr.mxu0 0.0
    %99 = vmatpush1.msra.mxu0 0.0
    %100 = vmatprep.subr.mxu0 0.0
    %101 = vmatpush1.msra.mxu0 0.0
    %102 = vmatprep.subr.mxu0 0.0
    %103 = vmatpush1.msra.mxu0 0.0
    %104 = vmatprep.subr.mxu0 0.0
    %105 = vmatpush1.msra.mxu0 0.0
    %106 = vmatprep.subr.mxu0 0.0
    %107 = vmatpush1.msra.mxu0 0.0
    %108 = vmatprep.subr.mxu0 0.0
    %109 = vmatpush1.msra.mxu0 0.0
    %110 = vmatprep.subr.mxu0 0.0
    %111 = vmatpush1.msra.mxu0 0.0
    %112 = vmatprep.subr.mxu0 0.0
    %113 = vmatpush1.msra.mxu0 0.0
    %114 = vmatprep.subr.mxu0 0.0
    %115 = vmatpush1.msra.mxu0 0.0
    %116 = vmatprep.subr.mxu0 0.0
    %117 = vmatpush1.msra.mxu0 0.0
    %118 = vmatprep.subr.mxu0 0.0
    %119 = vmatpush1.msra.mxu0 0.0
    %120 = vmatprep.subr.mxu0 0.0
    %121 = vmatpush1.msra.mxu0 0.0
    %122 = vmatprep.subr.mxu0 0.0
    %123 = vmatpush1.msra.mxu0 0.0
    %124 = vmatprep.mubr.f32.mxu0 0.0
    %125 = vmatmul.mubr.f32.gmra.mrb[0].mxu0 %v58
    %v126 = vpop.f32.mrb[0].mxu0
    %v127 = vadd.f32 %v54, %v126
    %v128 = vpop.f32.mrb[0].mxu0
    %129 = vdwg.mxu0
    %vm130 = vcmask 257024
    %131 = vst.msk [vmem:[#allocation7] sm:$0xf] %vm130, %v127
    %133 = vrot.lane.b32.xlu0 %v127, 96
    %v134 = vpop.permute.xlu0 %133
    %vm136 = vcmask 60416
    %137 = vst.msk [vmem:[#allocation8] sm:$0xf] %vm136, %v134
    // Predicated region
    $region22: #{tpu_custom_call.1} parent=1 // pred_check
      _
    $region23: #{tpu_custom_call.1} parent=1 // pred_check_branch
      %139 = sbr.rel (0) target = $region25
    $region24: #{tpu_custom_call.1} parent=1 // pred_region
      %s141 = ssub.s32 64, 64
      %142 = vsyncadd [#allocation4], %s141
      %s144 = sshll.u32 [#allocation7], 4
      %s145 = int_to_ptr.vmem [resolvable:$true] %s144
      %147 = dma.vmem_to_hbm [thread:$0]  %s145, 64, %s3, [#allocation4]
    $region25: #{tpu_custom_call.1} parent=1 // pred_fallthru
      _
    // Predicated region
    $region26: #{tpu_custom_call.1} parent=1 // pred_check
      _
    $region27: #{tpu_custom_call.1} parent=1 // pred_check_branch
      %149 = sbr.rel (0) target = $region29
    $region28: #{tpu_custom_call.1} parent=1 // pred_region
      %s151 = ssub.s32 64, 64
      %152 = vsyncadd [#allocation9], %s151
      %s154 = sshll.u32 [#allocation8], 4
      %s155 = int_to_ptr.vmem [resolvable:$true] %s154
      %157 = dma.vmem_to_hbm [thread:$0]  %s155, 64, %s4, [#allocation9]
    $region29: #{tpu_custom_call.1} parent=1 // pred_fallthru
      _
    // Predicated region
    $region30: #{tpu_custom_call.1} parent=1 // pred_check
      _
    $region31: #{tpu_custom_call.1} parent=1 // pred_check_branch
      %159 = sbr.rel (0) target = $region33
    $region32: #{tpu_custom_call.1} parent=1 // pred_region
      %160 = dma.done [#allocation4], 64
    $region33: #{tpu_custom_call.1} parent=1 // pred_fallthru
      _
    // Predicated region
    $region34: #{tpu_custom_call.1} parent=1 // pred_check
      _
    $region35: #{tpu_custom_call.1} parent=1 // pred_check_branch
      %162 = sbr.rel (0) target = $region37
    $region36: #{tpu_custom_call.1} parent=1 // pred_region
      %163 = dma.done [#allocation9], 64
    $region37: #{tpu_custom_call.1} parent=1 // pred_fallthru
      _
    %164 = vsyncpa [#allocation3], 1
    %165 = vsyncpa [#allocation6], 1
    %166 = vsyncpa [#allocation4], 1
    %167 = vsyncpa [#allocation9], 1

</llo_original>
